<compile_context>
chip_gen: v7x
topology: tpu7x:2x2x1
jax: 0.10.0
libtpu: 0.0.40
codegen_flags: <defaults>
</compile_context>

<pallas_src>
import jax
import jax.numpy as jnp
from jax.experimental import pallas as pl
from jax.experimental.pallas import tpu as pltpu

ARTICLE_PROJ = 1024  # self.article_proj in the reference module


# ---------------------------------------------------------------------------
# Fused kernel: lin1-fold -> SAGEConv x3 (+ReLU) -> lin2, all VMEM-resident.
# ---------------------------------------------------------------------------
def _encoder_kernel(x_art_ref,   # (F_art, 1)      bf16  article features (column)
                    x_comm_ref,  # (Nc, F_comm)    bf16
                    a12_ref,     # (2*Nc, F_art)   bf16  folded mean(edge)*w_lin1
                    c12_ref,     # (2*Nc, 1)       f32   folded mean(edge)*b_lin1
                    m3_ref,      # (Nc, Nc)        bf16  dense mean matrix (interacts)
                    wl1_ref,     # (1, H)          f32   rank-1 lin_l factor, conv1
                    wl2_ref,     # (1, H)          f32   rank-1 lin_l factor, conv2
                    wr13_ref,    # (F_comm, 2H)    bf16  wr1t | wr3t concatenated
                    wr2t_ref,    # (H, H)          bf16
                    wl3t_ref,    # (H, H)          bf16
                    b1_ref, b2_ref, b3_ref,        # (1, H) f32
                    w_lin2p_ref,  # (H, OUT_PAD)   bf16  lin2 weight, 128-lane padded
                    b_lin2p_ref,  # (1, OUT_PAD)   f32
                    o_ref):       # (Nc, OUT_PAD)  f32
    f32 = jnp.float32
    bf16 = jnp.bfloat16
    nc = m3_ref.shape[0]
    h = wl1_ref.shape[1]

    # Both SAGE mean-aggregations of the (folded) lin1 projection in one MXU
    # matvec: u12 = A12 @ x_art + c12, then split into conv1 / conv2 parts.
    u12 = (jnp.dot(a12_ref[...], x_art_ref[...], preferred_element_type=f32)
           + c12_ref[...])                                            # (2Nc, 1)
    u1 = u12[:nc]
    u2 = u12[nc:]

    # Shared lin_r matmul for conv1 and conv3 (same LHS x_comm): one MXU push.
    xc_wr = jnp.dot(x_comm_ref[...], wr13_ref[...],
                    preferred_element_type=f32)                       # (Nc, 2H)
    xc_wr1 = xc_wr[:, :h]
    xc_wr3 = xc_wr[:, h:]

    # conv1 ('written_by') + ReLU: lin_l of a scalar feature is rank-1 u1*wl1.
    h1 = jnp.maximum(u1 * wl1_ref[...] + xc_wr1 + b1_ref[...], 0.0)   # (Nc, H)

    # conv2 ('mentioned_by') + ReLU.
    h2 = jnp.maximum(
        u2 * wl2_ref[...]
        + jnp.dot(h1.astype(bf16), wr2t_ref[...], preferred_element_type=f32)
        + b2_ref[...], 0.0)                                           # (Nc, H)

    # conv3 ('interacts_with') + ReLU: dense mean aggregation on the MXU.
    agg3 = jnp.dot(m3_ref[...], h2.astype(bf16),
                   preferred_element_type=f32)                        # (Nc, H)
    h3 = jnp.maximum(
        jnp.dot(agg3.astype(bf16), wl3t_ref[...], preferred_element_type=f32)
        + xc_wr3 + b3_ref[...], 0.0)                                  # (Nc, H)

    # lin2, zero-padded to a lane-dense (>=128) output; wrapper slices back.
    o_ref[...] = (jnp.dot(h3.astype(bf16), w_lin2p_ref[...],
                          preferred_element_type=f32)
                  + b_lin2p_ref[...])


# ---------------------------------------------------------------------------
# Wrapper-side graph folding (once per graph, segment-sums only)
# ---------------------------------------------------------------------------
def _fold_article_messages(edge_index, w_lin1t, b_lin1, n_dst):
    """Fold the article->community SAGE mean through lin1.

    For a destination community c:
        mean_{(a,c) in E} (x_art @ w_lin1t + b_lin1)[0, a]
          = A[c, :] . x_art[0, :] + cb[c]
    with A[c,:] = mean_{(a,c)} w_lin1t[:, a] and cb[c] = mean_{(a,c)} b_lin1[0, a].
    Destinations with no incoming edge get zero rows (matches PyG scatter-mean).
    """
    src, dst = edge_index[0], edge_index[1]
    f_art = w_lin1t.shape[0]
    rows = jnp.take(w_lin1t.T, src, axis=0)                    # (E, F_art)
    bvals = jnp.take(b_lin1[0], src)[:, None]                  # (E, 1)
    a_sum = jnp.zeros((n_dst, f_art), jnp.float32).at[dst].add(rows)
    c_sum = jnp.zeros((n_dst, 1), jnp.float32).at[dst].add(bvals)
    cnt = jnp.zeros((n_dst, 1), jnp.float32).at[dst].add(1.0)
    inv = 1.0 / jnp.maximum(cnt, 1.0)
    return a_sum * inv, c_sum * inv


def _mean_matrix(edge_index, n_src, n_dst):
    """Dense degree-normalized mean-aggregation matrix (n_dst, n_src)."""
    src, dst = edge_index[0], edge_index[1]
    m = jnp.zeros((n_dst, n_src), jnp.float32).at[dst, src].add(1.0)
    deg = m.sum(axis=1, keepdims=True)
    return m / jnp.maximum(deg, 1.0)


def community_article_gnn_encoder(article_x, community_x,
                                  ei_written, ei_mentioned, ei_interacts,
                                  params):
    bf16 = jnp.bfloat16
    n_comm = community_x.shape[0]
    f_art = article_x.shape[1]
    f_comm = community_x.shape[1]
    hidden = params["wr2t"].shape[0]
    out_channels = params["w_lin2t"].shape[1]
    out_pad = 128 * pl.cdiv(out_channels, 128)     # lane-dense output width

    # --- graph / algebraic folding (once per graph, outside the kernel) -----
    a1, c1 = _fold_article_messages(ei_written, params["w_lin1t"],
                                    params["b_lin1"], n_comm)
    a2, c2 = _fold_article_messages(ei_mentioned, params["w_lin1t"],
                                    params["b_lin1"], n_comm)
    a12 = jnp.concatenate([a1, a2], axis=0).astype(bf16)        # (2Nc, F_art)
    c12 = jnp.concatenate([c1, c2], axis=0)                     # (2Nc, 1) f32
    m3 = _mean_matrix(ei_interacts, n_comm, n_comm).astype(bf16)

    x_art_col = article_x.reshape(f_art, 1).astype(bf16)
    x_comm_bf = community_x.astype(bf16)
    wr13 = jnp.concatenate([params["wr1t"], params["wr3t"]], axis=1).astype(bf16)
    wr2t_bf = params["wr2t"].astype(bf16)
    wl3t_bf = params["wl3t"].astype(bf16)
    w_lin2p = (jnp.zeros((hidden, out_pad), jnp.float32)
               .at[:, :out_channels].set(params["w_lin2t"]).astype(bf16))
    b_lin2p = (jnp.zeros((1, out_pad), jnp.float32)
               .at[:, :out_channels].set(params["b_lin2"]))

    args = (x_art_col, x_comm_bf, a12, c12, m3,
            params["wl1"], params["wl2"],
            wr13, wr2t_bf, wl3t_bf,
            params["b1"], params["b2"], params["b3"],
            w_lin2p, b_lin2p)

    flops = 2 * (2 * n_comm * f_art                 # stacked u1/u2 matvec
                 + n_comm * f_comm * 2 * hidden     # x_comm @ [wr1|wr3]
                 + 2 * n_comm * hidden * hidden     # wr2t dot + wl3t dot
                 + n_comm * n_comm * hidden         # mean aggregation conv3
                 + n_comm * hidden * out_pad)       # lin2 (padded)
    bytes_accessed = (sum(int(a.size) * a.dtype.itemsize for a in args)
                      + n_comm * out_pad * 4)

    vmem = pltpu.MemorySpace.VMEM
    out = pl.pallas_call(
        _encoder_kernel,
        out_shape=jax.ShapeDtypeStruct((n_comm, out_pad), jnp.float32),
        in_specs=[pl.BlockSpec(memory_space=vmem) for _ in args],
        out_specs=pl.BlockSpec(memory_space=vmem),
        compiler_params=pltpu.CompilerParams(vmem_limit_bytes=32 * 1024 * 1024),
        cost_estimate=pl.CostEstimate(flops=int(flops), transcendentals=0,
                                      bytes_accessed=int(bytes_accessed)),
    )(*args)
    return out[:, :out_channels]


# ---------------------------------------------------------------------------
# Pure-JAX f32 reference (mirrors the torch / PyG semantics op by op)
# ---------------------------------------------------------------------------
def _reference(article_x, community_x, ei_written, ei_mentioned, ei_interacts,
               params):
    art_col = (article_x @ params["w_lin1t"] + params["b_lin1"]
               ).reshape(ARTICLE_PROJ, 1)

    def sage(x_src, x_dst, ei, wl, wr, b):
        src, dst = ei[0], ei[1]
        n_dst = x_dst.shape[0]
        msgs = x_src[src]
        summed = jnp.zeros((n_dst, x_src.shape[1]), jnp.float32).at[dst].add(msgs)
        cnt = jnp.zeros((n_dst, 1), jnp.float32).at[dst].add(1.0)
        agg = summed / jnp.maximum(cnt, 1.0)
        return agg @ wl + x_dst @ wr + b

    h1 = jax.nn.relu(sage(art_col, community_x, ei_written,
                          params["wl1"], params["wr1t"], params["b1"]))
    h2 = jax.nn.relu(sage(art_col, h1, ei_mentioned,
                          params["wl2"], params["wr2t"], params["b2"]))
    h3 = jax.nn.relu(sage(h2, community_x, ei_interacts,
                          params["wl3t"], params["wr3t"], params["b3"]))
    return h3 @ params["w_lin2t"] + params["b_lin2"]


# ---------------------------------------------------------------------------
# Main
# ---------------------------------------------------------------------------
if __name__ == "__main__":
    N_COMM, F_COMM, F_ART, HIDDEN, OUT = 16, 64, 32, 32, 8
    E1, E2, E3 = 48, 48, 40

    key = jax.random.PRNGKey(0)
    ks = iter(jax.random.split(key, 32))

    def dense(shape, scale=0.1):
        return (scale * jax.random.normal(next(ks), shape)).astype(jnp.float32)

    # data['article'].x has a single row so that the module's
    # reshape((article_proj, 1)) is well-defined.
    article_x = dense((1, F_ART), 1.0)
    community_x = dense((N_COMM, F_COMM), 1.0)

    def edges(n_src, n_dst, e):
        s = jax.random.randint(next(ks), (e,), 0, n_src, dtype=jnp.int32)
        d = jax.random.randint(next(ks), (e,), 0, n_dst, dtype=jnp.int32)
        return jnp.stack([s, d], axis=0)

    ei_written = edges(ARTICLE_PROJ, N_COMM, E1)     # article -> community
    ei_mentioned = edges(ARTICLE_PROJ, N_COMM, E2)   # article -> community
    ei_interacts = edges(N_COMM, N_COMM, E3)         # community -> community

    # Weights stored pre-transposed as (in, out).
    params = dict(
        w_lin1t=dense((F_ART, ARTICLE_PROJ)), b_lin1=dense((1, ARTICLE_PROJ)),
        wl1=dense((1, HIDDEN)), wr1t=dense((F_COMM, HIDDEN)), b1=dense((1, HIDDEN)),
        wl2=dense((1, HIDDEN)), wr2t=dense((HIDDEN, HIDDEN)), b2=dense((1, HIDDEN)),
        wl3t=dense((HIDDEN, HIDDEN)), wr3t=dense((F_COMM, HIDDEN)), b3=dense((1, HIDDEN)),
        w_lin2t=dense((HIDDEN, OUT)), b_lin2=dense((1, OUT)),
    )

    out = community_article_gnn_encoder(article_x, community_x,
                                        ei_written, ei_mentioned, ei_interacts,
                                        params)
    jax.block_until_ready(out)
    assert out.shape == (N_COMM, OUT) and out.dtype == jnp.float32

    ref = _reference(article_x, community_x, ei_written, ei_mentioned,
                     ei_interacts, params)
    # Tolerance accounts for bf16 MXU operands (f32 accumulation everywhere).
    assert jnp.allclose(out, ref, atol=5e-2, rtol=5e-2), \
        float(jnp.max(jnp.abs(out - ref)))

    print("KERNEL_OK")
</pallas_src>

<mosaic_0001>
module attributes {stable_mosaic.version = 11 : i64} {
  func.func @_encoder_kernel(%arg0: memref<32x1xbf16, #tpu.memory_space<vmem>>, %arg1: memref<16x64xbf16, #tpu.memory_space<vmem>>, %arg2: memref<32x32xbf16, #tpu.memory_space<vmem>>, %arg3: memref<32x1xf32, #tpu.memory_space<vmem>>, %arg4: memref<16x16xbf16, #tpu.memory_space<vmem>>, %arg5: memref<1x32xf32, #tpu.memory_space<vmem>>, %arg6: memref<1x32xf32, #tpu.memory_space<vmem>>, %arg7: memref<64x64xbf16, #tpu.memory_space<vmem>>, %arg8: memref<32x32xbf16, #tpu.memory_space<vmem>>, %arg9: memref<32x32xbf16, #tpu.memory_space<vmem>>, %arg10: memref<1x32xf32, #tpu.memory_space<vmem>>, %arg11: memref<1x32xf32, #tpu.memory_space<vmem>>, %arg12: memref<1x32xf32, #tpu.memory_space<vmem>>, %arg13: memref<32x128xbf16, #tpu.memory_space<vmem>>, %arg14: memref<1x128xf32, #tpu.memory_space<vmem>>, %arg15: memref<16x128xf32, #tpu.memory_space<vmem>>) attributes {dimension_semantics = [], scalar_prefetch = 0 : i64, scratch_operands = 0 : i64, tpu.core_type = #tpu.core_type<tc>} {
    %c0 = arith.constant 0 : index
    %c0_0 = arith.constant 0 : index
    %0 = vector.load %arg2[%c0, %c0_0] : memref<32x32xbf16, #tpu.memory_space<vmem>>, vector<32x32xbf16>
    %c0_1 = arith.constant 0 : index
    %c0_2 = arith.constant 0 : index
    %1 = vector.load %arg0[%c0_1, %c0_2] : memref<32x1xbf16, #tpu.memory_space<vmem>>, vector<32x1xbf16>
    %cst = arith.constant dense<0.000000e+00> : vector<32x1xf32>
    %2 = tpu.matmul %0, %1, %cst {dimension_numbers = #tpu.dot_dimension_numbers<[1], [0], [0], [1], [0, 0, 1, 1], [], []>} : vector<32x32xbf16>, vector<32x1xbf16>, vector<32x1xf32> -> vector<32x1xf32>
    %c0_3 = arith.constant 0 : index
    %c0_4 = arith.constant 0 : index
    %3 = vector.load %arg3[%c0_3, %c0_4] : memref<32x1xf32, #tpu.memory_space<vmem>>, vector<32x1xf32>
    %4 = arith.addf %2, %3 : vector<32x1xf32>
    %5 = vector.extract_strided_slice %4 {offsets = [0, 0], sizes = [16, 1], strides = [1, 1]} : vector<32x1xf32> to vector<16x1xf32>
    %6 = vector.extract_strided_slice %4 {offsets = [16, 0], sizes = [16, 1], strides = [1, 1]} : vector<32x1xf32> to vector<16x1xf32>
    %c0_5 = arith.constant 0 : index
    %c0_6 = arith.constant 0 : index
    %7 = vector.load %arg1[%c0_5, %c0_6] : memref<16x64xbf16, #tpu.memory_space<vmem>>, vector<16x64xbf16>
    %c0_7 = arith.constant 0 : index
    %c0_8 = arith.constant 0 : index
    %8 = vector.load %arg7[%c0_7, %c0_8] : memref<64x64xbf16, #tpu.memory_space<vmem>>, vector<64x64xbf16>
    %cst_9 = arith.constant dense<0.000000e+00> : vector<16x64xf32>
    %9 = tpu.matmul %7, %8, %cst_9 {dimension_numbers = #tpu.dot_dimension_numbers<[1], [0], [0], [1], [0, 0, 1, 1], [], []>} : vector<16x64xbf16>, vector<64x64xbf16>, vector<16x64xf32> -> vector<16x64xf32>
    %10 = vector.extract_strided_slice %9 {offsets = [0, 0], sizes = [16, 32], strides = [1, 1]} : vector<16x64xf32> to vector<16x32xf32>
    %11 = vector.extract_strided_slice %9 {offsets = [0, 32], sizes = [16, 32], strides = [1, 1]} : vector<16x64xf32> to vector<16x32xf32>
    %c0_10 = arith.constant 0 : index
    %c0_11 = arith.constant 0 : index
    %12 = vector.load %arg5[%c0_10, %c0_11] : memref<1x32xf32, #tpu.memory_space<vmem>>, vector<1x32xf32>
    %13 = vector.broadcast %5 : vector<16x1xf32> to vector<16x32xf32>
    %14 = vector.broadcast %12 : vector<1x32xf32> to vector<16x32xf32>
    %15 = arith.mulf %13, %14 : vector<16x32xf32>
    %16 = arith.addf %15, %10 : vector<16x32xf32>
    %c0_12 = arith.constant 0 : index
    %c0_13 = arith.constant 0 : index
    %17 = vector.load %arg10[%c0_12, %c0_13] : memref<1x32xf32, #tpu.memory_space<vmem>>, vector<1x32xf32>
    %18 = vector.broadcast %17 : vector<1x32xf32> to vector<16x32xf32>
    %19 = arith.addf %16, %18 : vector<16x32xf32>
    %cst_14 = arith.constant 0.000000e+00 : f32
    %20 = vector.broadcast %cst_14 : f32 to vector<16x32xf32>
    %21 = arith.maximumf %19, %20 : vector<16x32xf32>
    %c0_15 = arith.constant 0 : index
    %c0_16 = arith.constant 0 : index
    %22 = vector.load %arg6[%c0_15, %c0_16] : memref<1x32xf32, #tpu.memory_space<vmem>>, vector<1x32xf32>
    %23 = vector.broadcast %6 : vector<16x1xf32> to vector<16x32xf32>
    %24 = vector.broadcast %22 : vector<1x32xf32> to vector<16x32xf32>
    %25 = arith.mulf %23, %24 : vector<16x32xf32>
    %26 = arith.truncf %21 : vector<16x32xf32> to vector<16x32xbf16>
    %c0_17 = arith.constant 0 : index
    %c0_18 = arith.constant 0 : index
    %27 = vector.load %arg8[%c0_17, %c0_18] : memref<32x32xbf16, #tpu.memory_space<vmem>>, vector<32x32xbf16>
    %cst_19 = arith.constant dense<0.000000e+00> : vector<16x32xf32>
    %28 = tpu.matmul %26, %27, %cst_19 {dimension_numbers = #tpu.dot_dimension_numbers<[1], [0], [0], [1], [0, 0, 1, 1], [], []>} : vector<16x32xbf16>, vector<32x32xbf16>, vector<16x32xf32> -> vector<16x32xf32>
    %29 = arith.addf %25, %28 : vector<16x32xf32>
    %c0_20 = arith.constant 0 : index
    %c0_21 = arith.constant 0 : index
    %30 = vector.load %arg11[%c0_20, %c0_21] : memref<1x32xf32, #tpu.memory_space<vmem>>, vector<1x32xf32>
    %31 = vector.broadcast %30 : vector<1x32xf32> to vector<16x32xf32>
    %32 = arith.addf %29, %31 : vector<16x32xf32>
    %cst_22 = arith.constant 0.000000e+00 : f32
    %33 = vector.broadcast %cst_22 : f32 to vector<16x32xf32>
    %34 = arith.maximumf %32, %33 : vector<16x32xf32>
    %c0_23 = arith.constant 0 : index
    %c0_24 = arith.constant 0 : index
    %35 = vector.load %arg4[%c0_23, %c0_24] : memref<16x16xbf16, #tpu.memory_space<vmem>>, vector<16x16xbf16>
    %36 = arith.truncf %34 : vector<16x32xf32> to vector<16x32xbf16>
    %cst_25 = arith.constant dense<0.000000e+00> : vector<16x32xf32>
    %37 = tpu.matmul %35, %36, %cst_25 {dimension_numbers = #tpu.dot_dimension_numbers<[1], [0], [0], [1], [0, 0, 1, 1], [], []>} : vector<16x16xbf16>, vector<16x32xbf16>, vector<16x32xf32> -> vector<16x32xf32>
    %38 = arith.truncf %37 : vector<16x32xf32> to vector<16x32xbf16>
    %c0_26 = arith.constant 0 : index
    %c0_27 = arith.constant 0 : index
    %39 = vector.load %arg9[%c0_26, %c0_27] : memref<32x32xbf16, #tpu.memory_space<vmem>>, vector<32x32xbf16>
    %cst_28 = arith.constant dense<0.000000e+00> : vector<16x32xf32>
    %40 = tpu.matmul %38, %39, %cst_28 {dimension_numbers = #tpu.dot_dimension_numbers<[1], [0], [0], [1], [0, 0, 1, 1], [], []>} : vector<16x32xbf16>, vector<32x32xbf16>, vector<16x32xf32> -> vector<16x32xf32>
    %41 = arith.addf %40, %11 : vector<16x32xf32>
    %c0_29 = arith.constant 0 : index
    %c0_30 = arith.constant 0 : index
    %42 = vector.load %arg12[%c0_29, %c0_30] : memref<1x32xf32, #tpu.memory_space<vmem>>, vector<1x32xf32>
    %43 = vector.broadcast %42 : vector<1x32xf32> to vector<16x32xf32>
    %44 = arith.addf %41, %43 : vector<16x32xf32>
    %cst_31 = arith.constant 0.000000e+00 : f32
    %45 = vector.broadcast %cst_31 : f32 to vector<16x32xf32>
    %46 = arith.maximumf %44, %45 : vector<16x32xf32>
    %47 = arith.truncf %46 : vector<16x32xf32> to vector<16x32xbf16>
    %c0_32 = arith.constant 0 : index
    %c0_33 = arith.constant 0 : index
    %48 = vector.load %arg13[%c0_32, %c0_33] : memref<32x128xbf16, #tpu.memory_space<vmem>>, vector<32x128xbf16>
    %cst_34 = arith.constant dense<0.000000e+00> : vector<16x128xf32>
    %49 = tpu.matmul %47, %48, %cst_34 {dimension_numbers = #tpu.dot_dimension_numbers<[1], [0], [0], [1], [0, 0, 1, 1], [], []>} : vector<16x32xbf16>, vector<32x128xbf16>, vector<16x128xf32> -> vector<16x128xf32>
    %c0_35 = arith.constant 0 : index
    %c0_36 = arith.constant 0 : index
    %50 = vector.load %arg14[%c0_35, %c0_36] : memref<1x128xf32, #tpu.memory_space<vmem>>, vector<1x128xf32>
    %51 = vector.broadcast %50 : vector<1x128xf32> to vector<16x128xf32>
    %52 = arith.addf %49, %51 : vector<16x128xf32>
    %c0_37 = arith.constant 0 : index
    %c0_38 = arith.constant 0 : index
    %53 = vector.load %arg15[%c0_37, %c0_38] : memref<16x128xf32, #tpu.memory_space<vmem>>, vector<16x128xf32>
    tpu.vector_store %arg15[%c0_37, %c0_38], %52 {strides = array<i32>} : memref<16x128xf32, #tpu.memory_space<vmem>>, vector<16x128xf32>,
    return
  }
}

</mosaic_0001>

<llo_original>
// kernel: tpu_custom_call.1
$region0: #{tpu_custom_call.1}
  #allocation0 [shape = 'u32[]', space=smem, size = 0x4, offset = 0x4, fixed_abs, tag = 'smem constant byte address 0x4 - core index']
  #allocation1 [shape = 'u32[144,128]{1,0:T(1,128)}', space=vmem, size = 0x12000, scoped, tag = 'internal scratch']
  %s0 = inlined_call_operand.vmem [shape: bf16[32,1], index: 0, kind: input, shape index: {}]
  %s1 = inlined_call_operand.hbm [shape: bf16[16,64], index: 1, kind: input, shape index: {}]
  %s2 = inlined_call_operand.vmem [shape: bf16[32,32], index: 2, kind: input, shape index: {}]
  %s3 = inlined_call_operand.vmem [shape: f32[32,1], index: 3, kind: input, shape index: {}]
  %s4 = inlined_call_operand.hbm [shape: bf16[16,16], index: 4, kind: input, shape index: {}]
  %s5 = inlined_call_operand.hbm [shape: f32[1,32], index: 5, kind: input, shape index: {}]
  %s6 = inlined_call_operand.hbm [shape: f32[1,32], index: 6, kind: input, shape index: {}]
  %s7 = inlined_call_operand.vmem [shape: bf16[64,64], index: 7, kind: input, shape index: {}]
  %s8 = inlined_call_operand.vmem [shape: bf16[32,32], index: 8, kind: input, shape index: {}]
  %s9 = inlined_call_operand.vmem [shape: bf16[32,32], index: 9, kind: input, shape index: {}]
  %s10 = inlined_call_operand.vmem [shape: f32[1,32], index: 10, kind: input, shape index: {}]
  %s11 = inlined_call_operand.vmem [shape: f32[1,32], index: 11, kind: input, shape index: {}]
  %s12 = inlined_call_operand.vmem [shape: f32[1,32], index: 12, kind: input, shape index: {}]
  %s13 = inlined_call_operand.vmem [shape: bf16[32,128], index: 13, kind: input, shape index: {}]
  %s14 = inlined_call_operand.vmem [shape: f32[1,128], index: 14, kind: input, shape index: {}]
  %s15 = inlined_call_operand.hbm [shape: f32[16,128], index: 15, kind: output, shape index: {}]
  %s16 = sld [smem:[#allocation0]]
  $region86: #{tpu_custom_call.1} parent=0
    _
  %s18 = ssub.s32 1, %s16
  %s19 = scalar_select 0, %s18, %s16
  $region1: #{tpu_custom_call.1} parent=0
    #allocation2 [shape = 'u8[4096]{0}', space=vmem, size = 0x1000, scoped, tag = 'input window, operand 1, single buffered']
    #allocation3 [shape = 's32[1]{0}', space=sflag, size = 0x4, scoped, tag = 'scoped memory for tpu_custom_call.1']
    #allocation4 [shape = 's32[1]{0}', space=sflag, size = 0x4, scoped, tag = 'scoped memory for tpu_custom_call.1']
    #allocation5 [shape = 'u8[4096]{0}', space=vmem, size = 0x1000, scoped, tag = 'input window, operand 4, single buffered']
    #allocation6 [shape = 's32[1]{0}', space=sflag, size = 0x4, scoped, tag = 'scoped memory for tpu_custom_call.1']
    #allocation7 [shape = 'u8[512]{0}', space=vmem, size = 0x400, scoped, tag = 'input window, operand 5, single buffered']
    #allocation8 [shape = 'u8[512]{0}', space=vmem, size = 0x400, scoped, tag = 'input window, operand 6, single buffered']
    #allocation9 [shape = 's32[1]{0}', space=sflag, size = 0x4, scoped, tag = 'scoped memory for tpu_custom_call.1']
    #allocation10 [shape = 'u8[8192]{0}', space=vmem, size = 0x2000, scoped, tag = 'output window, operand 0, single buffered']
    %20 = vsyncpa [#allocation3], 0
    %21 = vsyncpa [#allocation6], 0
    %22 = vsyncpa [#allocation9], 0
    %23 = vsyncpa [#allocation4], 0
    // Predicated region
    $region2: #{tpu_custom_call.1} parent=1 // pred_check
      _
    $region3: #{tpu_custom_call.1} parent=1 // pred_check_branch
      %25 = sbr.rel (0) target = $region5
    $region4: #{tpu_custom_call.1} parent=1 // pred_region
      _
    $region5: #{tpu_custom_call.1} parent=1 // pred_fallthru
      _
    // Predicated region
    $region6: #{tpu_custom_call.1} parent=1 // pred_check
      _
    $region7: #{tpu_custom_call.1} parent=1 // pred_check_branch
      %27 = sbr.rel (0) target = $region9
    $region8: #{tpu_custom_call.1} parent=1 // pred_region
      %s29 = ssub.s32 128, 128
      %30 = vsyncadd [#allocation3], %s29
      %s31 = sshll.u32 [#allocation2], 4
      %s32 = int_to_ptr.vmem [resolvable:$true] %s31
      %37 = dma.hbm_to_vmem [thread:$0]  %s1, 128, %s32, [#allocation3], 64, 64, 4
    $region9: #{tpu_custom_call.1} parent=1 // pred_fallthru
      _
    // Predicated region
    $region10: #{tpu_custom_call.1} parent=1 // pred_check
      _
    $region11: #{tpu_custom_call.1} parent=1 // pred_check_branch
      %39 = sbr.rel (0) target = $region13
    $region12: #{tpu_custom_call.1} parent=1 // pred_region
      _
    $region13: #{tpu_custom_call.1} parent=1 // pred_fallthru
      _
    // Predicated region
    $region14: #{tpu_custom_call.1} parent=1 // pred_check
      _
    $region15: #{tpu_custom_call.1} parent=1 // pred_check_branch
      %41 = sbr.rel (0) target = $region17
    $region16: #{tpu_custom_call.1} parent=1 // pred_region
      _
    $region17: #{tpu_custom_call.1} parent=1 // pred_fallthru
      _
    // Predicated region
    $region18: #{tpu_custom_call.1} parent=1 // pred_check
      _
    $region19: #{tpu_custom_call.1} parent=1 // pred_check_branch
      %43 = sbr.rel (0) target = $region21
    $region20: #{tpu_custom_call.1} parent=1 // pred_region
      %s45 = ssub.s32 128, 128
      %46 = vsyncadd [#allocation6], %s45
      %s47 = sshll.u32 [#allocation5], 4
      %s48 = int_to_ptr.vmem [resolvable:$true] %s47
      %53 = dma.hbm_to_vmem [thread:$0]  %s4, 128, %s48, [#allocation6], 64, 64, 4
    $region21: #{tpu_custom_call.1} parent=1 // pred_fallthru
      _
    // Predicated region
    $region22: #{tpu_custom_call.1} parent=1 // pred_check
      _
    $region23: #{tpu_custom_call.1} parent=1 // pred_check_branch
      %55 = sbr.rel (0) target = $region25
    $region24: #{tpu_custom_call.1} parent=1 // pred_region
      %s57 = ssub.s32 16, 16
      %58 = vsyncadd [#allocation6], %s57
      %s60 = sshll.u32 [#allocation7], 4
      %s61 = int_to_ptr.vmem [resolvable:$true] %s60
      %63 = dma.hbm_to_vmem [thread:$0]  %s5, 16, %s61, [#allocation6]
    $region25: #{tpu_custom_call.1} parent=1 // pred_fallthru
      _
    // Predicated region
    $region26: #{tpu_custom_call.1} parent=1 // pred_check
      _
    $region27: #{tpu_custom_call.1} parent=1 // pred_check_branch
      %65 = sbr.rel (0) target = $region29
    $region28: #{tpu_custom_call.1} parent=1 // pred_region
      %s67 = ssub.s32 16, 16
      %68 = vsyncadd [#allocation9], %s67
      %s70 = sshll.u32 [#allocation8], 4
      %s71 = int_to_ptr.vmem [resolvable:$true] %s70
      %73 = dma.hbm_to_vmem [thread:$0]  %s6, 16, %s71, [#allocation9]
    $region29: #{tpu_custom_call.1} parent=1 // pred_fallthru
      _
    // Predicated region
    $region30: #{tpu_custom_call.1} parent=1 // pred_check
      _
    $region31: #{tpu_custom_call.1} parent=1 // pred_check_branch
      %75 = sbr.rel (0) target = $region33
    $region32: #{tpu_custom_call.1} parent=1 // pred_region
      _
    $region33: #{tpu_custom_call.1} parent=1 // pred_fallthru
      _
    // Predicated region
    $region34: #{tpu_custom_call.1} parent=1 // pred_check
      _
    $region35: #{tpu_custom_call.1} parent=1 // pred_check_branch
      %77 = sbr.rel (0) target = $region37
    $region36: #{tpu_custom_call.1} parent=1 // pred_region
      _
    $region37: #{tpu_custom_call.1} parent=1 // pred_fallthru
      _
    // Predicated region
    $region38: #{tpu_custom_call.1} parent=1 // pred_check
      _
    $region39: #{tpu_custom_call.1} parent=1 // pred_check_branch
      %79 = sbr.rel (0) target = $region41
    $region40: #{tpu_custom_call.1} parent=1 // pred_region
      _
    $region41: #{tpu_custom_call.1} parent=1 // pred_fallthru
      _
    // Predicated region
    $region42: #{tpu_custom_call.1} parent=1 // pred_check
      _
    $region43: #{tpu_custom_call.1} parent=1 // pred_check_branch
      %81 = sbr.rel (0) target = $region45
    $region44: #{tpu_custom_call.1} parent=1 // pred_region
      _
    $region45: #{tpu_custom_call.1} parent=1 // pred_fallthru
      _
    // Predicated region
    $region46: #{tpu_custom_call.1} parent=1 // pred_check
      _
    $region47: #{tpu_custom_call.1} parent=1 // pred_check_branch
      %83 = sbr.rel (0) target = $region49
    $region48: #{tpu_custom_call.1} parent=1 // pred_region
      _
    $region49: #{tpu_custom_call.1} parent=1 // pred_fallthru
      _
    // Predicated region
    $region50: #{tpu_custom_call.1} parent=1 // pred_check
      _
    $region51: #{tpu_custom_call.1} parent=1 // pred_check_branch
      %85 = sbr.rel (0) target = $region53
    $region52: #{tpu_custom_call.1} parent=1 // pred_region
      _
    $region53: #{tpu_custom_call.1} parent=1 // pred_fallthru
      _
    // Predicated region
    $region54: #{tpu_custom_call.1} parent=1 // pred_check
      _
    $region55: #{tpu_custom_call.1} parent=1 // pred_check_branch
      %87 = sbr.rel (0) target = $region57
    $region56: #{tpu_custom_call.1} parent=1 // pred_region
      _
    $region57: #{tpu_custom_call.1} parent=1 // pred_fallthru
      _
    // Predicated region
    $region58: #{tpu_custom_call.1} parent=1 // pred_check
      _
    $region59: #{tpu_custom_call.1} parent=1 // pred_check_branch
      %89 = sbr.rel (0) target = $region61
    $region60: #{tpu_custom_call.1} parent=1 // pred_region
      _
    $region61: #{tpu_custom_call.1} parent=1 // pred_fallthru
      _
    // Predicated region
    $region62: #{tpu_custom_call.1} parent=1 // pred_check
      _
    $region63: #{tpu_custom_call.1} parent=1 // pred_check_branch
      %91 = sbr.rel (0) target = $region65
    $region64: #{tpu_custom_call.1} parent=1 // pred_region
      %92 = dma.done [#allocation3], 128
    $region65: #{tpu_custom_call.1} parent=1 // pred_fallthru
      _
    // Predicated region
    $region66: #{tpu_custom_call.1} parent=1 // pred_check
      _
    $region67: #{tpu_custom_call.1} parent=1 // pred_check_branch
      %94 = sbr.rel (0) target = $region69
    $region68: #{tpu_custom_call.1} parent=1 // pred_region
      %95 = dma.done [#allocation6], 128
    $region69: #{tpu_custom_call.1} parent=1 // pred_fallthru
      _
    // Predicated region
    $region70: #{tpu_custom_call.1} parent=1 // pred_check
      _
    $region71: #{tpu_custom_call.1} parent=1 // pred_check_branch
      %97 = sbr.rel (0) target = $region73
    $region72: #{tpu_custom_call.1} parent=1 // pred_region
      %98 = dma.done [#allocation6], 16
    $region73: #{tpu_custom_call.1} parent=1 // pred_fallthru
      _
    // Predicated region
    $region74: #{tpu_custom_call.1} parent=1 // pred_check
      _
    $region75: #{tpu_custom_call.1} parent=1 // pred_check_branch
      %100 = sbr.rel (0) target = $region77
    $region76: #{tpu_custom_call.1} parent=1 // pred_region
      %101 = dma.done [#allocation9], 16
    $region77: #{tpu_custom_call.1} parent=1 // pred_fallthru
      _
    %v103 = vld [vmem:[%s2] sm:$0xf]
    %v104 = vld [vmem:[%s2 + $0x4] sm:$0xf]
    %v105 = vld [vmem:[%s2 + $0x8] sm:$0xf]
    %v106 = vld [vmem:[%s2 + $0xc] sm:$0xf]
    %v107 = vld [vmem:[%s0] sm:$0xf]
    %v108 = vld [vmem:[%s0 + $0x4] sm:$0xf]
    %v109 = vld [vmem:[%s0 + $0x8] sm:$0xf]
    %v110 = vld [vmem:[%s0 + $0xc] sm:$0xf]
    %v111 = vld [vmem:[%s3] sm:$0xff]
    %v112 = vld [vmem:[%s3 + $0x8] sm:$0xff]
    %v113 = vld [vmem:[%s3 + $0x10] sm:$0xff]
    %v114 = vld [vmem:[%s3 + $0x18] sm:$0xff]
    %v119 = vunpack.c.l.b16 %v103
    %v120 = vunpack.c.l.b16 %v104
    %v121 = vunpack.c.l.b16 %v105
    %v122 = vunpack.c.l.b16 %v106
    %v123 = vpack.c.b16 %v120, %v119
    %v124 = vpack.c.b16 %v122, %v121
    %v129 = vunpack.c.l.b16 %v107
    %v130 = vunpack.c.l.b16 %v108
    %v131 = vunpack.c.l.b16 %v109
    %v132 = vunpack.c.l.b16 %v110
    %v133 = vpack.c.b16 %v130, %v129
    %v134 = vpack.c.b16 %v132, %v131
    %vm137 = vcmask 261120
    %v139 = vsel %vm137, %v123, 0
    %v142 = vsel %vm137, %v124, 0
    %144 = vmatprep.subr.bf16.mxu0 0
    %145 = vmatpush1.bf16.msra.mxu0 %v133
    %146 = vmatprep.subr.bf16.mxu0 0
    %147 = vmatpush1.bf16.msra.mxu0 %v134
    %148 = vmatprep.subr.bf16.mxu0 0
    %149 = vmatpush1.bf16.msra.mxu0 0
    %150 = vmatprep.subr.bf16.mxu0 0
    %151 = vmatpush1.bf16.msra.mxu0 0
    %152 = vmatprep.subr.bf16.mxu0 0
    %153 = vmatpush1.bf16.msra.mxu0 0
    %154 = vmatprep.subr.bf16.mxu0 0
    %155 = vmatpush1.bf16.msra.mxu0 0
    %156 = vmatprep.subr.bf16.mxu0 0
    %157 = vmatpush1.bf16.msra.mxu0 0
    %158 = vmatprep.subr.bf16.mxu0 0
    %159 = vmatpush1.bf16.msra.mxu0 0
    %160 = vmatprep.subr.bf16.mxu0 0
    %161 = vmatpush1.bf16.msra.mxu0 0
    %162 = vmatprep.subr.bf16.mxu0 0
    %163 = vmatpush1.bf16.msra.mxu0 0
    %164 = vmatprep.subr.bf16.mxu0 0
    %165 = vmatpush1.bf16.msra.mxu0 0
    %166 = vmatprep.subr.bf16.mxu0 0
    %167 = vmatpush1.bf16.msra.mxu0 0
    %168 = vmatprep.subr.bf16.mxu0 0
    %169 = vmatpush1.bf16.msra.mxu0 0
    %170 = vmatprep.subr.bf16.mxu0 0
    %171 = vmatpush1.bf16.msra.mxu0 0
    %172 = vmatprep.subr.bf16.mxu0 0
    %173 = vmatpush1.bf16.msra.mxu0 0
    %174 = vmatprep.subr.bf16.mxu0 0
    %175 = vmatpush1.bf16.msra.mxu0 0
    %176 = vmatprep.mubr.bf16.mxu0 0
    %177 = vmatmul.mubr.bf16.gmra.mrb[0].mxu0 %v139
    %v178 = vpop.f32.mrb[0].mxu0
    %v179 = vadd.f32 %v111, %v178
    %v180 = vpop.f32.mrb[0].mxu0
    %v181 = vpop.f32.mrb[0].mxu0
    %v182 = vadd.f32 %v112, %v181
    %v183 = vpop.f32.mrb[0].mxu0
    %184 = vmatprep.mubr.bf16.mxu0 0
    %185 = vmatmul.mubr.bf16.gmra.mrb[0].mxu0 %v142
    %v186 = vpop.f32.mrb[0].mxu0
    %v187 = vadd.f32 %v113, %v186
    %v188 = vpop.f32.mrb[0].mxu0
    %v189 = vpop.f32.mrb[0].mxu0
    %v190 = vadd.f32 %v114, %v189
    %v191 = vpop.f32.mrb[0].mxu0
    %192 = vdwg.mxu0
    %v193 = vld [vmem:[#allocation2] sm:$0xf]
    %v194 = vld [vmem:[#allocation2 + $0x4] sm:$0xf]
    %v195 = vld [vmem:[%s7] sm:$0xf]
    %v196 = vld [vmem:[%s7 + $0x4] sm:$0xf]
    %v197 = vld [vmem:[%s7 + $0x8] sm:$0xf]
    %v198 = vld [vmem:[%s7 + $0xc] sm:$0xf]
    %v199 = vld [vmem:[%s7 + $0x10] sm:$0xf]
    %v200 = vld [vmem:[%s7 + $0x14] sm:$0xf]
    %v201 = vld [vmem:[%s7 + $0x18] sm:$0xf]
    %v202 = vld [vmem:[%s7 + $0x1c] sm:$0xf]
    %v205 = vunpack.c.l.b16 %v193
    %v206 = vunpack.c.l.b16 %v194
    %v207 = vpack.c.b16 %v206, %v205
    %v216 = vunpack.c.l.b16 %v195
    %v217 = vunpack.c.l.b16 %v196
    %v218 = vunpack.c.l.b16 %v197
    %v219 = vunpack.c.l.b16 %v198
    %v220 = vunpack.c.l.b16 %v199
    %v221 = vunpack.c.l.b16 %v200
    %v222 = vunpack.c.l.b16 %v201
    %v223 = vunpack.c.l.b16 %v202
    %v224 = vpack.c.b16 %v217, %v216
    %v225 = vpack.c.b16 %v219, %v218
    %v226 = vpack.c.b16 %v221, %v220
    %v227 = vpack.c.b16 %v223, %v222
    %vm232 = vcmask 523264
    %v234 = vsel %vm232, %v207, 0
    %236 = vmatprep.subr.bf16.mxu0 0
    %237 = vmatpush1.bf16.msra.mxu0 %v224
    %238 = vmatprep.subr.bf16.mxu0 0
    %239 = vmatpush1.bf16.msra.mxu0 %v225
    %240 = vmatprep.subr.bf16.mxu0 0
    %241 = vmatpush1.bf16.msra.mxu0 %v226
    %242 = vmatprep.subr.bf16.mxu0 0
    %243 = vmatpush1.bf16.msra.mxu0 %v227
    %244 = vmatprep.subr.bf16.mxu0 0
    %245 = vmatpush1.bf16.msra.mxu0 0
    %246 = vmatprep.subr.bf16.mxu0 0
    %247 = vmatpush1.bf16.msra.mxu0 0
    %248 = vmatprep.subr.bf16.mxu0 0
    %249 = vmatpush1.bf16.msra.mxu0 0
    %250 = vmatprep.subr.bf16.mxu0 0
    %251 = vmatpush1.bf16.msra.mxu0 0
    %252 = vmatprep.subr.bf16.mxu0 0
    %253 = vmatpush1.bf16.msra.mxu0 0
    %254 = vmatprep.subr.bf16.mxu0 0
    %255 = vmatpush1.bf16.msra.mxu0 0
    %256 = vmatprep.subr.bf16.mxu0 0
    %257 = vmatpush1.bf16.msra.mxu0 0
    %258 = vmatprep.subr.bf16.mxu0 0
    %259 = vmatpush1.bf16.msra.mxu0 0
    %260 = vmatprep.subr.bf16.mxu0 0
    %261 = vmatpush1.bf16.msra.mxu0 0
    %262 = vmatprep.subr.bf16.mxu0 0
    %263 = vmatpush1.bf16.msra.mxu0 0
    %264 = vmatprep.subr.bf16.mxu0 0
    %265 = vmatpush1.bf16.msra.mxu0 0
    %266 = vmatprep.subr.bf16.mxu0 0
    %267 = vmatpush1.bf16.msra.mxu0 0
    %268 = vmatprep.mubr.bf16.mxu0 0
    %269 = vmatmul.mubr.bf16.gmra.mrb[0].mxu0 %v234
    %v270 = vpop.f32.mrb[0].mxu0
    %v271 = vadd.f32 0.0, %v270
    %v272 = vpop.f32.mrb[0].mxu0
    %v273 = vpop.f32.mrb[0].mxu0
    %v274 = vadd.f32 0.0, %v273
    %v275 = vpop.f32.mrb[0].mxu0
    %276 = vdwg.mxu0
    %v277 = vld [vmem:[#allocation7] sm:$0x1]
    %279 = vset.pattern.permute.xlu0 0
    %280 = vperm.xlu0 %279, %v179
    %v281 = vpop.permute.xlu0 %280
    %284 = vset.pattern.permute.xlu0 0
    %285 = vperm.xlu0 %284, %v182
    %v286 = vpop.permute.xlu0 %285
    %v289 = vlaneseq
    %v290 = vshrl.u32 %v289, 7
    %v291 = vsub.s32 0, %v290
    %v292 = vrot.slane %v277, %v291
    %v294 = vmul.f32 %v281, %v292
    %v295 = vmul.f32 %v286, %v292
    %v296 = vadd.f32 %v294, %v271
    %v297 = vadd.f32 %v295, %v274
    %v298 = vld [vmem:[%s10] sm:$0x1]
    %v300 = vlaneseq
    %v301 = vshrl.u32 %v300, 7
    %v302 = vsub.s32 0, %v301
    %v303 = vrot.slane %v298, %v302
    %v305 = vadd.f32 %v296, %v303
    %v306 = vadd.f32 %v297, %v303
    %v307 = vmax.f32 %v305, 0.0
    %v308 = vmax.f32 %v306, 0.0
    %v309 = vld [vmem:[#allocation8] sm:$0x1]
    %311 = vset.pattern.permute.xlu0 0
    %312 = vperm.xlu0 %311, %v187
    %v313 = vpop.permute.xlu0 %312
    %316 = vset.pattern.permute.xlu0 0
    %317 = vperm.xlu0 %316, %v190
    %v318 = vpop.permute.xlu0 %317
    %v321 = vlaneseq
    %v322 = vshrl.u32 %v321, 7
    %v323 = vsub.s32 0, %v322
    %v324 = vrot.slane %v309, %v323
    %v326 = vmul.f32 %v313, %v324
    %v327 = vmul.f32 %v318, %v324
    %v328 = vpack.c.bf16 %v308, %v307
    %v329 = vld [vmem:[%s8] sm:$0xf]
    %v330 = vld [vmem:[%s8 + $0x4] sm:$0xf]
    %v331 = vld [vmem:[%s8 + $0x8] sm:$0xf]
    %v332 = vld [vmem:[%s8 + $0xc] sm:$0xf]
    %v337 = vunpack.c.l.b16 %v329
    %v338 = vunpack.c.l.b16 %v330
    %v339 = vunpack.c.l.b16 %v331
    %v340 = vunpack.c.l.b16 %v332
    %v341 = vpack.c.b16 %v338, %v337
    %v342 = vpack.c.b16 %v340, %v339
    %v346 = vsel %vm137, %v328, 0
    %348 = vmatprep.subr.bf16.mxu0 0
    %349 = vmatpush1.bf16.msra.mxu0 %v341
    %350 = vmatprep.subr.bf16.mxu0 0
    %351 = vmatpush1.bf16.msra.mxu0 %v342
    %352 = vmatprep.subr.bf16.mxu0 0
    %353 = vmatpush1.bf16.msra.mxu0 0
    %354 = vmatprep.subr.bf16.mxu0 0
    %355 = vmatpush1.bf16.msra.mxu0 0
    %356 = vmatprep.subr.bf16.mxu0 0
    %357 = vmatpush1.bf16.msra.mxu0 0
    %358 = vmatprep.subr.bf16.mxu0 0
    %359 = vmatpush1.bf16.msra.mxu0 0
    %360 = vmatprep.subr.bf16.mxu0 0
    %361 = vmatpush1.bf16.msra.mxu0 0
    %362 = vmatprep.subr.bf16.mxu0 0
    %363 = vmatpush1.bf16.msra.mxu0 0
    %364 = vmatprep.subr.bf16.mxu0 0
    %365 = vmatpush1.bf16.msra.mxu0 0
    %366 = vmatprep.subr.bf16.mxu0 0
    %367 = vmatpush1.bf16.msra.mxu0 0
    %368 = vmatprep.subr.bf16.mxu0 0
    %369 = vmatpush1.bf16.msra.mxu0 0
    %370 = vmatprep.subr.bf16.mxu0 0
    %371 = vmatpush1.bf16.msra.mxu0 0
    %372 = vmatprep.subr.bf16.mxu0 0
    %373 = vmatpush1.bf16.msra.mxu0 0
    %374 = vmatprep.subr.bf16.mxu0 0
    %375 = vmatpush1.bf16.msra.mxu0 0
    %376 = vmatprep.subr.bf16.mxu0 0
    %377 = vmatpush1.bf16.msra.mxu0 0
    %378 = vmatprep.subr.bf16.mxu0 0
    %379 = vmatpush1.bf16.msra.mxu0 0
    %380 = vmatprep.mubr.bf16.mxu0 0
    %381 = vmatmul.mubr.bf16.gmra.mrb[0].mxu0 %v346
    %v382 = vpop.f32.mrb[0].mxu0
    %v383 = vadd.f32 0.0, %v382
    %v384 = vpop.f32.mrb[0].mxu0
    %v385 = vpop.f32.mrb[0].mxu0
    %v386 = vadd.f32 0.0, %v385
    %v387 = vpop.f32.mrb[0].mxu0
    %388 = vdwg.mxu0
    %v389 = vadd.f32 %v326, %v383
    %v390 = vadd.f32 %v327, %v386
    %v391 = vld [vmem:[%s11] sm:$0x1]
    %v393 = vlaneseq
    %v394 = vshrl.u32 %v393, 7
    %v395 = vsub.s32 0, %v394
    %v396 = vrot.slane %v391, %v395
    %v398 = vadd.f32 %v389, %v396
    %v399 = vadd.f32 %v390, %v396
    %v400 = vmax.f32 %v398, 0.0
    %v401 = vmax.f32 %v399, 0.0
    %v402 = vld [vmem:[#allocation5] sm:$0xf]
    %v403 = vld [vmem:[#allocation5 + $0x4] sm:$0xf]
    %v404 = vpack.c.bf16 %v401, %v400
    %v407 = vunpack.c.l.b16 %v402
    %v408 = vunpack.c.l.b16 %v403
    %v409 = vpack.c.b16 %v408, %v407
    %vm410 = vcmask 130048
    %v412 = vsel %vm410, %v409, 0
    %414 = vmatprep.subr.bf16.mxu0 0
    %415 = vmatpush1.bf16.msra.mxu0 %v404
    %416 = vmatprep.subr.bf16.mxu0 0
    %417 = vmatpush1.bf16.msra.mxu0 0
    %418 = vmatprep.subr.bf16.mxu0 0
    %419 = vmatpush1.bf16.msra.mxu0 0
    %420 = vmatprep.subr.bf16.mxu0 0
    %421 = vmatpush1.bf16.msra.mxu0 0
    %422 = vmatprep.subr.bf16.mxu0 0
    %423 = vmatpush1.bf16.msra.mxu0 0
    %424 = vmatprep.subr.bf16.mxu0 0
    %425 = vmatpush1.bf16.msra.mxu0 0
    %426 = vmatprep.subr.bf16.mxu0 0
    %427 = vmatpush1.bf16.msra.mxu0 0
    %428 = vmatprep.subr.bf16.mxu0 0
    %429 = vmatpush1.bf16.msra.mxu0 0
    %430 = vmatprep.subr.bf16.mxu0 0
    %431 = vmatpush1.bf16.msra.mxu0 0
    %432 = vmatprep.subr.bf16.mxu0 0
    %433 = vmatpush1.bf16.msra.mxu0 0
    %434 = vmatprep.subr.bf16.mxu0 0
    %435 = vmatpush1.bf16.msra.mxu0 0
    %436 = vmatprep.subr.bf16.mxu0 0
    %437 = vmatpush1.bf16.msra.mxu0 0
    %438 = vmatprep.subr.bf16.mxu0 0
    %439 = vmatpush1.bf16.msra.mxu0 0
    %440 = vmatprep.subr.bf16.mxu0 0
    %441 = vmatpush1.bf16.msra.mxu0 0
    %442 = vmatprep.subr.bf16.mxu0 0
    %443 = vmatpush1.bf16.msra.mxu0 0
    %444 = vmatprep.subr.bf16.mxu0 0
    %445 = vmatpush1.bf16.msra.mxu0 0
    %446 = vmatprep.mubr.bf16.mxu0 0
    %447 = vmatmul.mubr.bf16.gmra.mrb[0].mxu0 %v412
    %v448 = vpop.f32.mrb[0].mxu0
    %v449 = vadd.f32 0.0, %v448
    %v450 = vpop.f32.mrb[0].mxu0
    %v451 = vpop.f32.mrb[0].mxu0
    %v452 = vadd.f32 0.0, %v451
    %v453 = vpop.f32.mrb[0].mxu0
    %454 = vdwg.mxu0
    %v455 = vpack.c.bf16 %v452, %v449
    %v456 = vld [vmem:[%s9] sm:$0xf]
    %v457 = vld [vmem:[%s9 + $0x4] sm:$0xf]
    %v458 = vld [vmem:[%s9 + $0x8] sm:$0xf]
    %v459 = vld [vmem:[%s9 + $0xc] sm:$0xf]
    %v464 = vunpack.c.l.b16 %v456
    %v465 = vunpack.c.l.b16 %v457
    %v466 = vunpack.c.l.b16 %v458
    %v467 = vunpack.c.l.b16 %v459
    %v468 = vpack.c.b16 %v465, %v464
    %v469 = vpack.c.b16 %v467, %v466
    %474 = vrot.lane.b32.xlu0 %v271, 96
    %v475 = vpop.permute.xlu0 %474
    %476 = vrot.lane.b32.xlu0 %v274, 96
    %v477 = vpop.permute.xlu0 %476
    %v481 = vsel %vm137, %v455, 0
    %483 = vmatprep.subr.bf16.mxu0 0
    %484 = vmatpush1.bf16.msra.mxu0 %v468
    %485 = vmatprep.subr.bf16.mxu0 0
    %486 = vmatpush1.bf16.msra.mxu0 %v469
    %487 = vmatprep.subr.bf16.mxu0 0
    %488 = vmatpush1.bf16.msra.mxu0 0
    %489 = vmatprep.subr.bf16.mxu0 0
    %490 = vmatpush1.bf16.msra.mxu0 0
    %491 = vmatprep.subr.bf16.mxu0 0
    %492 = vmatpush1.bf16.msra.mxu0 0
    %493 = vmatprep.subr.bf16.mxu0 0
    %494 = vmatpush1.bf16.msra.mxu0 0
    %495 = vmatprep.subr.bf16.mxu0 0
    %496 = vmatpush1.bf16.msra.mxu0 0
    %497 = vmatprep.subr.bf16.mxu0 0
    %498 = vmatpush1.bf16.msra.mxu0 0
    %499 = vmatprep.subr.bf16.mxu0 0
    %500 = vmatpush1.bf16.msra.mxu0 0
    %501 = vmatprep.subr.bf16.mxu0 0
    %502 = vmatpush1.bf16.msra.mxu0 0
    %503 = vmatprep.subr.bf16.mxu0 0
    %504 = vmatpush1.bf16.msra.mxu0 0
    %505 = vmatprep.subr.bf16.mxu0 0
    %506 = vmatpush1.bf16.msra.mxu0 0
    %507 = vmatprep.subr.bf16.mxu0 0
    %508 = vmatpush1.bf16.msra.mxu0 0
    %509 = vmatprep.subr.bf16.mxu0 0
    %510 = vmatpush1.bf16.msra.mxu0 0
    %511 = vmatprep.subr.bf16.mxu0 0
    %512 = vmatpush1.bf16.msra.mxu0 0
    %513 = vmatprep.subr.bf16.mxu0 0
    %514 = vmatpush1.bf16.msra.mxu0 0
    %515 = vmatprep.mubr.bf16.mxu0 0
    %516 = vmatmul.mubr.bf16.gmra.mrb[0].mxu0 %v481
    %v517 = vpop.f32.mrb[0].mxu0
    %v518 = vadd.f32 %v475, %v517
    %v519 = vpop.f32.mrb[0].mxu0
    %v520 = vpop.f32.mrb[0].mxu0
    %v521 = vadd.f32 %v477, %v520
    %v522 = vpop.f32.mrb[0].mxu0
    %523 = vdwg.mxu0
    %v524 = vld [vmem:[%s12] sm:$0x1]
    %v526 = vlaneseq
    %v527 = vshrl.u32 %v526, 7
    %v528 = vsub.s32 0, %v527
    %v529 = vrot.slane %v524, %v528
    %v531 = vadd.f32 %v518, %v529
    %v532 = vadd.f32 %v521, %v529
    %v533 = vmax.f32 %v531, 0.0
    %v534 = vmax.f32 %v532, 0.0
    %v535 = vpack.c.bf16 %v534, %v533
    %v536 = vld [vmem:[%s13] sm:$0xf]
    %v537 = vld [vmem:[%s13 + $0x4] sm:$0xf]
    %v538 = vld [vmem:[%s13 + $0x8] sm:$0xf]
    %v539 = vld [vmem:[%s13 + $0xc] sm:$0xf]
    %v540 = vld [vmem:[%s14] sm:$0x1]
    %v542 = vlaneseq
    %v543 = vshrl.u32 %v542, 7
    %v544 = vsub.s32 0, %v543
    %v545 = vrot.slane %v540, %v544
    %v551 = vunpack.c.l.b16 %v536
    %v552 = vunpack.c.l.b16 %v537
    %v553 = vunpack.c.l.b16 %v538
    %v554 = vunpack.c.l.b16 %v539
    %v555 = vpack.c.b16 %v552, %v551
    %v556 = vpack.c.b16 %v554, %v553
    %v560 = vsel %vm137, %v535, 0
    %562 = vmatprep.subr.bf16.mxu0 0
    %563 = vmatpush1.bf16.msra.mxu0 %v555
    %564 = vmatprep.subr.bf16.mxu0 0
    %565 = vmatpush1.bf16.msra.mxu0 %v556
    %566 = vmatprep.subr.bf16.mxu0 0
    %567 = vmatpush1.bf16.msra.mxu0 0
    %568 = vmatprep.subr.bf16.mxu0 0
    %569 = vmatpush1.bf16.msra.mxu0 0
    %570 = vmatprep.subr.bf16.mxu0 0
    %571 = vmatpush1.bf16.msra.mxu0 0
    %572 = vmatprep.subr.bf16.mxu0 0
    %573 = vmatpush1.bf16.msra.mxu0 0
    %574 = vmatprep.subr.bf16.mxu0 0
    %575 = vmatpush1.bf16.msra.mxu0 0
    %576 = vmatprep.subr.bf16.mxu0 0
    %577 = vmatpush1.bf16.msra.mxu0 0
    %578 = vmatprep.subr.bf16.mxu0 0
    %579 = vmatpush1.bf16.msra.mxu0 0
    %580 = vmatprep.subr.bf16.mxu0 0
    %581 = vmatpush1.bf16.msra.mxu0 0
    %582 = vmatprep.subr.bf16.mxu0 0
    %583 = vmatpush1.bf16.msra.mxu0 0
    %584 = vmatprep.subr.bf16.mxu0 0
    %585 = vmatpush1.bf16.msra.mxu0 0
    %586 = vmatprep.subr.bf16.mxu0 0
    %587 = vmatpush1.bf16.msra.mxu0 0
    %588 = vmatprep.subr.bf16.mxu0 0
    %589 = vmatpush1.bf16.msra.mxu0 0
    %590 = vmatprep.subr.bf16.mxu0 0
    %591 = vmatpush1.bf16.msra.mxu0 0
    %592 = vmatprep.subr.bf16.mxu0 0
    %593 = vmatpush1.bf16.msra.mxu0 0
    %594 = vmatprep.mubr.bf16.mxu0 0
    %595 = vmatmul.mubr.bf16.gmra.mrb[0].mxu0 %v560
    %v596 = vpop.f32.mrb[0].mxu0
    %v597 = vadd.f32 %v545, %v596
    %v598 = vpop.f32.mrb[0].mxu0
    %v599 = vpop.f32.mrb[0].mxu0
    %v600 = vadd.f32 %v545, %v599
    %v601 = vpop.f32.mrb[0].mxu0
    %602 = vdwg.mxu0
    %603 = vst [vmem:[#allocation10] sm:$0xff] %v597
    %604 = vst [vmem:[#allocation10 + $0x8] sm:$0xff] %v600
    // Predicated region
    $region78: #{tpu_custom_call.1} parent=1 // pred_check
      _
    $region79: #{tpu_custom_call.1} parent=1 // pred_check_branch
      %606 = sbr.rel (0) target = $region81
    $region80: #{tpu_custom_call.1} parent=1 // pred_region
      %s608 = ssub.s32 256, 256
      %609 = vsyncadd [#allocation4], %s608
      %s610 = sshll.u32 [#allocation10], 4
      %s611 = int_to_ptr.vmem [resolvable:$true] %s610
      %616 = dma.vmem_to_hbm [thread:$0]  %s611, 256, %s15, [#allocation4], 128, 128, 8
    $region81: #{tpu_custom_call.1} parent=1 // pred_fallthru
      _
    // Predicated region
    $region82: #{tpu_custom_call.1} parent=1 // pred_check
      _
    $region83: #{tpu_custom_call.1} parent=1 // pred_check_branch
      %618 = sbr.rel (0) target = $region85
    $region84: #{tpu_custom_call.1} parent=1 // pred_region
      %619 = dma.done [#allocation4], 256
    $region85: #{tpu_custom_call.1} parent=1 // pred_fallthru
      _
    %620 = vsyncpa [#allocation3], 1
    %621 = vsyncpa [#allocation6], 1
    %622 = vsyncpa [#allocation9], 1
    %623 = vsyncpa [#allocation4], 1

</llo_original>
